<compile_context>
chip_gen: v7x
topology: tpu7x:2x2x1
jax: 0.10.0
libtpu: 0.0.40
codegen_flags: <defaults>
</compile_context>

<pallas_src>
import functools

import jax
import jax.numpy as jnp
from jax.experimental import pallas as pl
from jax.experimental.pallas import tpu as pltpu

# ----------------------- small test hyper-parameters -------------------------
BATCH = 8
EMB_DIM = 32
HIDDEN_DIM = 32
N_LAYERS = 2        # kernel is written for exactly 2 layers (as in the module)
OUTPUT_DIM = 128    # vocab size
T_STEPS = 8         # decode steps folded into one kernel launch


def _lstm_gates(xh_bf16, c, w_ref, b_ref, hidden_dim):
    """One LSTM cell step with fused [x|h] @ [W_ih;W_hh].

    Gate order i, f, g, o.  i/f/o columns of w/b are pre-scaled by 0.5 offline so that
    sigmoid(z) = 0.5*(1+tanh(z/2)) needs only ONE tanh over the full [B,4H] gates tile.
    """
    H = hidden_dim
    gates = jnp.dot(xh_bf16, w_ref[...], preferred_element_type=jnp.float32) + b_ref[...]
    t = jnp.tanh(gates)                                    # single EUP pass, full width
    lane = jax.lax.broadcasted_iota(jnp.int32, gates.shape, 1)
    is_g = (lane >= 2 * H) & (lane < 3 * H)
    act = jnp.where(is_g, t, 0.5 * (t + 1.0))              # sigmoid on i/f/o, tanh on g
    i = act[:, 0 * H:1 * H]
    f = act[:, 1 * H:2 * H]
    g = act[:, 2 * H:3 * H]
    o = act[:, 3 * H:4 * H]
    c_new = f * c + i * g
    h_new = o * jnp.tanh(c_new)
    return h_new, c_new


def _decoder_kernel(
    # inputs (per-step / resident)
    ids_ref,        # VMEM [B, 1] int32     token ids for this step (block of [T,B,1])
    state_in_ref,   # VMEM [B, 4H] f32      initial packed state [h0|h1|c0|c1]
    w0_ref,         # VMEM [V+H, 4H] bf16   fused [emb@W_ih0^T ; W_hh0^T], i/f/o cols *0.5
    b0_ref,         # VMEM [1, 4H]  f32     (b_ih0+b_hh0), i/f/o cols *0.5
    w1_ref,         # VMEM [2H, 4H] bf16
    b1_ref,         # VMEM [1, 4H]  f32
    wfc_ref,        # VMEM [H, V]   bf16    fc_out weight (pre-transposed)
    bfc_ref,        # VMEM [1, V]   f32
    # outputs
    pred_ref,       # VMEM [B, V]   f32     prediction for this step (block of [T,B,V])
    state_out_ref,  # VMEM [B, 4H]  f32     final packed state (written on last step)
    # scratch (persists across grid steps)
    st_ref,         # VMEM [B, 4H]  f32     carried packed state
    *,
    batch, hidden_dim, vocab,
):
    H = hidden_dim
    t = pl.program_id(0)

    @pl.when(t == 0)
    def _():
        st_ref[...] = state_in_ref[...]

    state = st_ref[...]
    h0 = state[:, 0 * H:1 * H]
    h1 = state[:, 1 * H:2 * H]
    c0 = state[:, 2 * H:3 * H]
    c1 = state[:, 3 * H:4 * H]

    # ---- one-hot embedding gather (dropout(embedded) is identity in eval mode) ----
    ids = ids_ref[...]                                           # [B, 1] int32
    onehot = (jax.lax.broadcasted_iota(jnp.int32, (batch, vocab), 1) == ids
              ).astype(jnp.float32)                              # one VPU compare

    # ---- LSTM layer 0: one fused [onehot | h0] @ [table ; W_hh0^T] MXU push (K=V+H) ----
    xh0 = jnp.concatenate([onehot, h0], axis=-1).astype(jnp.bfloat16)
    h0n, c0n = _lstm_gates(xh0, c0, w0_ref, b0_ref, H)

    # (inter-layer dropout is identity in eval mode)

    # ---- LSTM layer 1: fused [h0n | h1] @ [W_ih1^T ; W_hh1^T] ----
    xh1 = jnp.concatenate([h0n, h1], axis=-1).astype(jnp.bfloat16)
    h1n, c1n = _lstm_gates(xh1, c1, w1_ref, b1_ref, H)

    # ---- fc_out(output.squeeze(0)) ----
    pred_ref[...] = (
        jnp.dot(h1n.astype(jnp.bfloat16), wfc_ref[...],
                preferred_element_type=jnp.float32)
        + bfc_ref[...]
    )

    # ---- single full-width packed state store (registers -> [B,4H]=[8,128]) ----
    new_state = jnp.concatenate([h0n, h1n, c0n, c1n], axis=-1)
    st_ref[...] = new_state

    @pl.when(t == pl.num_programs(0) - 1)
    def _():
        state_out_ref[...] = new_state


def decoder_forward_steps(input_ids, hidden, cell, params):
    """T teacher-forced applications of Decoder.forward in one kernel launch.

    input_ids: int32 [T, B]; hidden, cell: f32 [L, B, H]
    returns (predictions [T, B, V], hidden [L, B, H], cell [L, B, H])
    """
    B, H, V = BATCH, HIDDEN_DIM, OUTPUT_DIM
    T = input_ids.shape[0]

    # Pack state into one lane-dense [B, 4H] slab (PyTorch [L,B,H] layout kept outside).
    state = jnp.concatenate([hidden[0], hidden[1], cell[0], cell[1]], axis=-1)
    ids3 = input_ids.reshape(T, B, 1).astype(jnp.int32)

    kernel = functools.partial(_decoder_kernel, batch=B, hidden_dim=H, vocab=V)

    const2d = lambda t: (0, 0)   # resident blocks: DMA'd once, reused every step

    preds, state_new = pl.pallas_call(
        kernel,
        grid=(T,),
        out_shape=(
            jax.ShapeDtypeStruct((T, B, V), jnp.float32),
            jax.ShapeDtypeStruct((B, 4 * H), jnp.float32),
        ),
        in_specs=[
            pl.BlockSpec((None, B, 1), lambda t: (t, 0, 0)),          # ids (per step)
            pl.BlockSpec((B, 4 * H), const2d),                        # initial state
            pl.BlockSpec((V + H, 4 * H), const2d),                    # w0 (resident)
            pl.BlockSpec((1, 4 * H), const2d),                        # b0
            pl.BlockSpec((2 * H, 4 * H), const2d),                    # w1
            pl.BlockSpec((1, 4 * H), const2d),                        # b1
            pl.BlockSpec((H, V), const2d),                            # w_fc
            pl.BlockSpec((1, V), const2d),                            # b_fc
        ],
        out_specs=(
            pl.BlockSpec((None, B, V), lambda t: (t, 0, 0)),          # per-step prediction
            pl.BlockSpec((B, 4 * H), const2d),                        # final packed state
        ),
        scratch_shapes=[pltpu.VMEM((B, 4 * H), jnp.float32)],         # carried state
        compiler_params=pltpu.CompilerParams(dimension_semantics=("arbitrary",)),
    )(
        ids3, state,
        params["w0"], params["b0"], params["w1"], params["b1"],
        params["w_fc"], params["b_fc"],
    )

    hid_new = jnp.stack([state_new[:, 0:H], state_new[:, H:2 * H]], axis=0)
    cell_new = jnp.stack([state_new[:, 2 * H:3 * H], state_new[:, 3 * H:4 * H]], axis=0)
    return preds, hid_new, cell_new


def decoder_forward(input_ids, hidden, cell, params):
    """Exact equivalent of Decoder.forward(input, hidden, cell) — a single step (T=1)."""
    preds, hid_new, cell_new = decoder_forward_steps(input_ids[None], hidden, cell, params)
    return preds[0], hid_new, cell_new


def init_params(key):
    """Synthetic parameters. Returns (kernel params, raw PyTorch-layout params)."""
    E, H, V = EMB_DIM, HIDDEN_DIM, OUTPUT_DIM
    ks = jax.random.split(key, 11)
    scale = 0.1

    def rnd(k, shape):
        return (scale * jax.random.normal(k, shape)).astype(jnp.float32)

    emb = rnd(ks[0], (V, E))
    # PyTorch layout: weight_ih_l{k} [4H, in], weight_hh_l{k} [4H, H], biases [4H].
    w_ih0, w_hh0 = rnd(ks[1], (4 * H, E)), rnd(ks[2], (4 * H, H))
    b_ih0, b_hh0 = rnd(ks[3], (4 * H,)), rnd(ks[4], (4 * H,))
    w_ih1, w_hh1 = rnd(ks[5], (4 * H, H)), rnd(ks[6], (4 * H, H))
    b_ih1, b_hh1 = rnd(ks[7], (4 * H,)), rnd(ks[8], (4 * H,))
    w_fc, b_fc = rnd(ks[9], (V, H)), rnd(ks[10], (V,))

    raw = dict(emb=emb, w_ih0=w_ih0, w_hh0=w_hh0, b_ih0=b_ih0, b_hh0=b_hh0,
               w_ih1=w_ih1, w_hh1=w_hh1, b_ih1=b_ih1, b_hh1=b_hh1,
               w_fc=w_fc, b_fc=b_fc)

    # sigmoid(z) = 0.5*(1+tanh(z/2)): pre-scale i/f/o gate columns (and biases) by 0.5.
    col = jnp.arange(4 * H)
    is_g = (col >= 2 * H) & (col < 3 * H)
    half = jnp.where(is_g, 1.0, 0.5).astype(jnp.float32)

    # Embedding folded into W_ih0: table[v] = emb[v] @ W_ih0^T  -> one-hot MXU gather.
    table0 = emb @ w_ih0.T                                           # [V, 4H]
    w0 = (jnp.concatenate([table0, w_hh0.T], axis=0) * half).astype(jnp.bfloat16)
    b0 = ((b_ih0 + b_hh0) * half).reshape(1, 4 * H)
    w1 = (jnp.concatenate([w_ih1.T, w_hh1.T], axis=0) * half).astype(jnp.bfloat16)
    b1 = ((b_ih1 + b_hh1) * half).reshape(1, 4 * H)

    params = dict(
        w0=w0, b0=b0, w1=w1, b1=b1,
        w_fc=w_fc.T.astype(jnp.bfloat16),   # [H, V]
        b_fc=b_fc.reshape(1, V),
    )
    return params, raw


def decoder_reference(input_ids, hidden, cell, raw):
    """Pure-JAX f32 reference of the PyTorch Decoder (eval mode), scanned over T steps."""
    H = HIDDEN_DIM

    def lstm_cell(x, h, c, w_ih, w_hh, b_ih, b_hh):
        gates = x @ w_ih.T + h @ w_hh.T + b_ih + b_hh
        i = jax.nn.sigmoid(gates[:, 0 * H:1 * H])
        f = jax.nn.sigmoid(gates[:, 1 * H:2 * H])
        g = jnp.tanh(gates[:, 2 * H:3 * H])
        o = jax.nn.sigmoid(gates[:, 3 * H:4 * H])
        c_new = f * c + i * g
        return o * jnp.tanh(c_new), c_new

    def step(carry, ids):
        h, c = carry
        x = raw["emb"][ids]                              # embedding lookup
        h0n, c0n = lstm_cell(x, h[0], c[0], raw["w_ih0"], raw["w_hh0"],
                             raw["b_ih0"], raw["b_hh0"])
        h1n, c1n = lstm_cell(h0n, h[1], c[1], raw["w_ih1"], raw["w_hh1"],
                             raw["b_ih1"], raw["b_hh1"])
        pred = h1n @ raw["w_fc"].T + raw["b_fc"]
        return (jnp.stack([h0n, h1n]), jnp.stack([c0n, c1n])), pred

    (h, c), preds = jax.lax.scan(step, (hidden, cell), input_ids)
    return preds, h, c


if __name__ == "__main__":
    key = jax.random.PRNGKey(0)
    k_par, k_tok, k_h, k_c = jax.random.split(key, 4)

    params, raw = init_params(k_par)
    input_ids = jax.random.randint(k_tok, (T_STEPS, BATCH), 0, OUTPUT_DIM, dtype=jnp.int32)
    hidden = (0.1 * jax.random.normal(k_h, (N_LAYERS, BATCH, HIDDEN_DIM))).astype(jnp.float32)
    cell = (0.1 * jax.random.normal(k_c, (N_LAYERS, BATCH, HIDDEN_DIM))).astype(jnp.float32)

    # Multi-step (time loop folded into the kernel grid).
    fwd_steps = jax.jit(decoder_forward_steps)
    preds, hid_new, cell_new = fwd_steps(input_ids, hidden, cell, params)
    jax.block_until_ready((preds, hid_new, cell_new))

    assert preds.shape == (T_STEPS, BATCH, OUTPUT_DIM)
    assert hid_new.shape == (N_LAYERS, BATCH, HIDDEN_DIM)
    assert cell_new.shape == (N_LAYERS, BATCH, HIDDEN_DIM)

    # Numeric check against a pure-JAX f32 reference of the original module semantics
    # (kernel uses bf16 weights + embedding fold, hence the loose-ish tolerance).
    p_ref, h_ref, c_ref = decoder_reference(input_ids, hidden, cell, raw)
    assert bool(jnp.allclose(preds, p_ref, atol=2e-2, rtol=2e-2))
    assert bool(jnp.allclose(hid_new, h_ref, atol=2e-2, rtol=2e-2))
    assert bool(jnp.allclose(cell_new, c_ref, atol=2e-2, rtol=2e-2))

    # Single-step interface, matching Decoder.forward(input, hidden, cell) exactly.
    pred1, hid1, cell1 = jax.jit(decoder_forward)(input_ids[0], hidden, cell, params)
    jax.block_until_ready((pred1, hid1, cell1))
    assert pred1.shape == (BATCH, OUTPUT_DIM)
    assert bool(jnp.allclose(pred1, preds[0], atol=1e-5, rtol=1e-5))

    print("KERNEL_OK")
</pallas_src>

<mosaic_0001>
module attributes {stable_mosaic.version = 11 : i64} {
  func.func @_decoder_kernel(%arg0: i32, %arg1: memref<1x8x1xi32, #tpu.memory_space<vmem>>, %arg2: memref<8x128xf32, #tpu.memory_space<vmem>>, %arg3: memref<160x128xbf16, #tpu.memory_space<vmem>>, %arg4: memref<1x128xf32, #tpu.memory_space<vmem>>, %arg5: memref<64x128xbf16, #tpu.memory_space<vmem>>, %arg6: memref<1x128xf32, #tpu.memory_space<vmem>>, %arg7: memref<32x128xbf16, #tpu.memory_space<vmem>>, %arg8: memref<1x128xf32, #tpu.memory_space<vmem>>, %arg9: memref<1x8x128xf32, #tpu.memory_space<vmem>>, %arg10: memref<8x128xf32, #tpu.memory_space<vmem>>, %arg11: memref<8x128xf32, #tpu.memory_space<vmem>>) attributes {dimension_semantics = [#tpu.dimension_semantics<arbitrary>], iteration_bounds = array<i64: 8>, scalar_prefetch = 0 : i64, scratch_operands = 1 : i64, tpu.core_type = #tpu.core_type<tc>, window_params = [{transform_indices = @transform_0, window_bounds = array<i64: 1, 8, 1>}, {pipeline_mode = #tpu.pipeline_mode<synchronous>, transform_indices = @transform_1, window_bounds = array<i64: 8, 128>}, {pipeline_mode = #tpu.pipeline_mode<synchronous>, transform_indices = @transform_2, window_bounds = array<i64: 160, 128>}, {pipeline_mode = #tpu.pipeline_mode<synchronous>, transform_indices = @transform_3, window_bounds = array<i64: 1, 128>}, {pipeline_mode = #tpu.pipeline_mode<synchronous>, transform_indices = @transform_4, window_bounds = array<i64: 64, 128>}, {pipeline_mode = #tpu.pipeline_mode<synchronous>, transform_indices = @transform_5, window_bounds = array<i64: 1, 128>}, {pipeline_mode = #tpu.pipeline_mode<synchronous>, transform_indices = @transform_6, window_bounds = array<i64: 32, 128>}, {pipeline_mode = #tpu.pipeline_mode<synchronous>, transform_indices = @transform_7, window_bounds = array<i64: 1, 128>}, {transform_indices = @transform_8, window_bounds = array<i64: 1, 8, 128>}, {pipeline_mode = #tpu.pipeline_mode<synchronous>, transform_indices = @transform_9, window_bounds = array<i64: 8, 128>}]} {
    %c0_i32 = arith.constant 0 : i32
    %0 = arith.cmpi eq, %arg0, %c0_i32 : i32
    %1 = arith.extui %0 : i1 to i32
    %c0_i32_0 = arith.constant 0 : i32
    %2 = arith.cmpi ne, %1, %c0_i32_0 : i32
    scf.if %2 {
      %c0_31 = arith.constant 0 : index
      %c0_32 = arith.constant 0 : index
      %85 = vector.load %arg2[%c0_31, %c0_32] : memref<8x128xf32, #tpu.memory_space<vmem>>, vector<8x128xf32>
      %c0_33 = arith.constant 0 : index
      %c0_34 = arith.constant 0 : index
      %86 = vector.load %arg11[%c0_33, %c0_34] : memref<8x128xf32, #tpu.memory_space<vmem>>, vector<8x128xf32>
      tpu.vector_store %arg11[%c0_33, %c0_34], %85 {strides = array<i32>} : memref<8x128xf32, #tpu.memory_space<vmem>>, vector<8x128xf32>,
    } else {
    }
    %c0 = arith.constant 0 : index
    %c0_1 = arith.constant 0 : index
    %3 = vector.load %arg11[%c0, %c0_1] : memref<8x128xf32, #tpu.memory_space<vmem>>, vector<8x128xf32>
    %4 = vector.extract_strided_slice %3 {offsets = [0, 0], sizes = [8, 32], strides = [1, 1]} : vector<8x128xf32> to vector<8x32xf32>
    %5 = vector.extract_strided_slice %3 {offsets = [0, 32], sizes = [8, 32], strides = [1, 1]} : vector<8x128xf32> to vector<8x32xf32>
    %6 = vector.extract_strided_slice %3 {offsets = [0, 64], sizes = [8, 32], strides = [1, 1]} : vector<8x128xf32> to vector<8x32xf32>
    %7 = vector.extract_strided_slice %3 {offsets = [0, 96], sizes = [8, 32], strides = [1, 1]} : vector<8x128xf32> to vector<8x32xf32>
    %c0_2 = arith.constant 0 : index
    %c0_3 = arith.constant 0 : index
    %c0_4 = arith.constant 0 : index
    %8 = vector.load %arg1[%c0_2, %c0_3, %c0_4] : memref<1x8x1xi32, #tpu.memory_space<vmem>>, vector<1x8x1xi32>
    %9 = vector.shape_cast %8 : vector<1x8x1xi32> to vector<8x1xi32>
    %10 = tpu.iota {dimensions = array<i32: 1>} : vector<8x128xi32>
    %11 = vector.broadcast %9 : vector<8x1xi32> to vector<8x128xi32>
    %12 = arith.cmpi eq, %10, %11 : vector<8x128xi32>
    %13 = arith.extui %12 : vector<8x128xi1> to vector<8x128xi32>
    %14 = arith.sitofp %13 : vector<8x128xi32> to vector<8x128xf32>
    %15 = tpu.concatenate %14, %4 in 1 : vector<8x128xf32>, vector<8x32xf32> -> vector<8x160xf32>
    %16 = arith.truncf %15 : vector<8x160xf32> to vector<8x160xbf16>
    %c0_5 = arith.constant 0 : index
    %c0_6 = arith.constant 0 : index
    %17 = vector.load %arg3[%c0_5, %c0_6] : memref<160x128xbf16, #tpu.memory_space<vmem>>, vector<160x128xbf16>
    %cst = arith.constant dense<0.000000e+00> : vector<8x128xf32>
    %18 = tpu.matmul %16, %17, %cst {dimension_numbers = #tpu.dot_dimension_numbers<[1], [0], [0], [1], [0, 0, 1, 1], [], []>} : vector<8x160xbf16>, vector<160x128xbf16>, vector<8x128xf32> -> vector<8x128xf32>
    %c0_7 = arith.constant 0 : index
    %c0_8 = arith.constant 0 : index
    %19 = vector.load %arg4[%c0_7, %c0_8] : memref<1x128xf32, #tpu.memory_space<vmem>>, vector<1x128xf32>
    %20 = vector.broadcast %19 : vector<1x128xf32> to vector<8x128xf32>
    %21 = arith.addf %18, %20 : vector<8x128xf32>
    %22 = math.tanh %21 : vector<8x128xf32>
    %23 = tpu.iota {dimensions = array<i32: 1>} : vector<8x128xi32>
    %c64_i32 = arith.constant 64 : i32
    %24 = vector.broadcast %c64_i32 : i32 to vector<8x128xi32>
    %25 = arith.cmpi sge, %23, %24 : vector<8x128xi32>
    %c96_i32 = arith.constant 96 : i32
    %26 = vector.broadcast %c96_i32 : i32 to vector<8x128xi32>
    %27 = arith.cmpi slt, %23, %26 : vector<8x128xi32>
    %28 = arith.andi %25, %27 : vector<8x128xi1>
    %cst_9 = arith.constant 1.000000e+00 : f32
    %29 = vector.broadcast %cst_9 : f32 to vector<8x128xf32>
    %30 = arith.addf %22, %29 : vector<8x128xf32>
    %cst_10 = arith.constant 5.000000e-01 : f32
    %31 = vector.broadcast %cst_10 : f32 to vector<8x128xf32>
    %32 = arith.mulf %31, %30 : vector<8x128xf32>
    %33 = arith.select %28, %22, %32 : vector<8x128xi1>, vector<8x128xf32>
    %34 = vector.extract_strided_slice %33 {offsets = [0, 0], sizes = [8, 32], strides = [1, 1]} : vector<8x128xf32> to vector<8x32xf32>
    %35 = vector.extract_strided_slice %33 {offsets = [0, 32], sizes = [8, 32], strides = [1, 1]} : vector<8x128xf32> to vector<8x32xf32>
    %36 = vector.extract_strided_slice %33 {offsets = [0, 64], sizes = [8, 32], strides = [1, 1]} : vector<8x128xf32> to vector<8x32xf32>
    %37 = vector.extract_strided_slice %33 {offsets = [0, 96], sizes = [8, 32], strides = [1, 1]} : vector<8x128xf32> to vector<8x32xf32>
    %38 = arith.mulf %35, %6 : vector<8x32xf32>
    %39 = arith.mulf %34, %36 : vector<8x32xf32>
    %40 = arith.addf %38, %39 : vector<8x32xf32>
    %41 = math.tanh %40 : vector<8x32xf32>
    %42 = arith.mulf %37, %41 : vector<8x32xf32>
    %43 = tpu.concatenate %42, %5 in 1 : vector<8x32xf32>, vector<8x32xf32> -> vector<8x64xf32>
    %44 = arith.truncf %43 : vector<8x64xf32> to vector<8x64xbf16>
    %c0_11 = arith.constant 0 : index
    %c0_12 = arith.constant 0 : index
    %45 = vector.load %arg5[%c0_11, %c0_12] : memref<64x128xbf16, #tpu.memory_space<vmem>>, vector<64x128xbf16>
    %cst_13 = arith.constant dense<0.000000e+00> : vector<8x128xf32>
    %46 = tpu.matmul %44, %45, %cst_13 {dimension_numbers = #tpu.dot_dimension_numbers<[1], [0], [0], [1], [0, 0, 1, 1], [], []>} : vector<8x64xbf16>, vector<64x128xbf16>, vector<8x128xf32> -> vector<8x128xf32>
    %c0_14 = arith.constant 0 : index
    %c0_15 = arith.constant 0 : index
    %47 = vector.load %arg6[%c0_14, %c0_15] : memref<1x128xf32, #tpu.memory_space<vmem>>, vector<1x128xf32>
    %48 = vector.broadcast %47 : vector<1x128xf32> to vector<8x128xf32>
    %49 = arith.addf %46, %48 : vector<8x128xf32>
    %50 = math.tanh %49 : vector<8x128xf32>
    %51 = tpu.iota {dimensions = array<i32: 1>} : vector<8x128xi32>
    %c64_i32_16 = arith.constant 64 : i32
    %52 = vector.broadcast %c64_i32_16 : i32 to vector<8x128xi32>
    %53 = arith.cmpi sge, %51, %52 : vector<8x128xi32>
    %c96_i32_17 = arith.constant 96 : i32
    %54 = vector.broadcast %c96_i32_17 : i32 to vector<8x128xi32>
    %55 = arith.cmpi slt, %51, %54 : vector<8x128xi32>
    %56 = arith.andi %53, %55 : vector<8x128xi1>
    %cst_18 = arith.constant 1.000000e+00 : f32
    %57 = vector.broadcast %cst_18 : f32 to vector<8x128xf32>
    %58 = arith.addf %50, %57 : vector<8x128xf32>
    %cst_19 = arith.constant 5.000000e-01 : f32
    %59 = vector.broadcast %cst_19 : f32 to vector<8x128xf32>
    %60 = arith.mulf %59, %58 : vector<8x128xf32>
    %61 = arith.select %56, %50, %60 : vector<8x128xi1>, vector<8x128xf32>
    %62 = vector.extract_strided_slice %61 {offsets = [0, 0], sizes = [8, 32], strides = [1, 1]} : vector<8x128xf32> to vector<8x32xf32>
    %63 = vector.extract_strided_slice %61 {offsets = [0, 32], sizes = [8, 32], strides = [1, 1]} : vector<8x128xf32> to vector<8x32xf32>
    %64 = vector.extract_strided_slice %61 {offsets = [0, 64], sizes = [8, 32], strides = [1, 1]} : vector<8x128xf32> to vector<8x32xf32>
    %65 = vector.extract_strided_slice %61 {offsets = [0, 96], sizes = [8, 32], strides = [1, 1]} : vector<8x128xf32> to vector<8x32xf32>
    %66 = arith.mulf %63, %7 : vector<8x32xf32>
    %67 = arith.mulf %62, %64 : vector<8x32xf32>
    %68 = arith.addf %66, %67 : vector<8x32xf32>
    %69 = math.tanh %68 : vector<8x32xf32>
    %70 = arith.mulf %65, %69 : vector<8x32xf32>
    %71 = arith.truncf %70 : vector<8x32xf32> to vector<8x32xbf16>
    %c0_20 = arith.constant 0 : index
    %c0_21 = arith.constant 0 : index
    %72 = vector.load %arg7[%c0_20, %c0_21] : memref<32x128xbf16, #tpu.memory_space<vmem>>, vector<32x128xbf16>
    %cst_22 = arith.constant dense<0.000000e+00> : vector<8x128xf32>
    %73 = tpu.matmul %71, %72, %cst_22 {dimension_numbers = #tpu.dot_dimension_numbers<[1], [0], [0], [1], [0, 0, 1, 1], [], []>} : vector<8x32xbf16>, vector<32x128xbf16>, vector<8x128xf32> -> vector<8x128xf32>
    %c0_23 = arith.constant 0 : index
    %c0_24 = arith.constant 0 : index
    %74 = vector.load %arg8[%c0_23, %c0_24] : memref<1x128xf32, #tpu.memory_space<vmem>>, vector<1x128xf32>
    %75 = vector.broadcast %74 : vector<1x128xf32> to vector<8x128xf32>
    %76 = arith.addf %73, %75 : vector<8x128xf32>
    %c0_25 = arith.constant 0 : index
    %c0_26 = arith.constant 0 : index
    %c0_27 = arith.constant 0 : index
    %77 = vector.load %arg9[%c0_25, %c0_26, %c0_27] : memref<1x8x128xf32, #tpu.memory_space<vmem>>, vector<1x8x128xf32>
    %78 = vector.shape_cast %77 : vector<1x8x128xf32> to vector<8x128xf32>
    %79 = vector.shape_cast %76 : vector<8x128xf32> to vector<1x8x128xf32>
    tpu.vector_store %arg9[%c0_25, %c0_26, %c0_27], %79 {strides = array<i32>} : memref<1x8x128xf32, #tpu.memory_space<vmem>>, vector<1x8x128xf32>,
    %80 = tpu.concatenate %42, %70, %40, %68 in 1 : vector<8x32xf32>, vector<8x32xf32>, vector<8x32xf32>, vector<8x32xf32> -> vector<8x128xf32>
    %c0_28 = arith.constant 0 : index
    %c0_29 = arith.constant 0 : index
    %81 = vector.load %arg11[%c0_28, %c0_29] : memref<8x128xf32, #tpu.memory_space<vmem>>, vector<8x128xf32>
    tpu.vector_store %arg11[%c0_28, %c0_29], %80 {strides = array<i32>} : memref<8x128xf32, #tpu.memory_space<vmem>>, vector<8x128xf32>,
    %c7_i32 = arith.constant 7 : i32
    %82 = arith.cmpi eq, %arg0, %c7_i32 : i32
    %83 = arith.extui %82 : i1 to i32
    %c0_i32_30 = arith.constant 0 : i32
    %84 = arith.cmpi ne, %83, %c0_i32_30 : i32
    scf.if %84 {
      %c0_31 = arith.constant 0 : index
      %c0_32 = arith.constant 0 : index
      %85 = vector.load %arg10[%c0_31, %c0_32] : memref<8x128xf32, #tpu.memory_space<vmem>>, vector<8x128xf32>
      tpu.vector_store %arg10[%c0_31, %c0_32], %80 {strides = array<i32>} : memref<8x128xf32, #tpu.memory_space<vmem>>, vector<8x128xf32>,
    } else {
    }
    return
  }
  func.func @transform_0(%arg0: i32) -> (i32, i32, i32) {
    %c0_i32 = arith.constant 0 : i32
    %c0_i32_0 = arith.constant 0 : i32
    %c0_i32_1 = arith.constant 0 : i32
    return %arg0, %c0_i32, %c0_i32_0 : i32, i32, i32
  }
  func.func @transform_1(%arg0: i32) -> (i32, i32) {
    %c0_i32 = arith.constant 0 : i32
    %c0_i32_0 = arith.constant 0 : i32
    %c0_i32_1 = arith.constant 0 : i32
    return %c0_i32, %c0_i32_0 : i32, i32
  }
  func.func @transform_2(%arg0: i32) -> (i32, i32) {
    %c0_i32 = arith.constant 0 : i32
    %c0_i32_0 = arith.constant 0 : i32
    %c0_i32_1 = arith.constant 0 : i32
    return %c0_i32, %c0_i32_0 : i32, i32
  }
  func.func @transform_3(%arg0: i32) -> (i32, i32) {
    %c0_i32 = arith.constant 0 : i32
    %c0_i32_0 = arith.constant 0 : i32
    %c0_i32_1 = arith.constant 0 : i32
    return %c0_i32, %c0_i32_0 : i32, i32
  }
  func.func @transform_4(%arg0: i32) -> (i32, i32) {
    %c0_i32 = arith.constant 0 : i32
    %c0_i32_0 = arith.constant 0 : i32
    %c0_i32_1 = arith.constant 0 : i32
    return %c0_i32, %c0_i32_0 : i32, i32
  }
  func.func @transform_5(%arg0: i32) -> (i32, i32) {
    %c0_i32 = arith.constant 0 : i32
    %c0_i32_0 = arith.constant 0 : i32
    %c0_i32_1 = arith.constant 0 : i32
    return %c0_i32, %c0_i32_0 : i32, i32
  }
  func.func @transform_6(%arg0: i32) -> (i32, i32) {
    %c0_i32 = arith.constant 0 : i32
    %c0_i32_0 = arith.constant 0 : i32
    %c0_i32_1 = arith.constant 0 : i32
    return %c0_i32, %c0_i32_0 : i32, i32
  }
  func.func @transform_7(%arg0: i32) -> (i32, i32) {
    %c0_i32 = arith.constant 0 : i32
    %c0_i32_0 = arith.constant 0 : i32
    %c0_i32_1 = arith.constant 0 : i32
    return %c0_i32, %c0_i32_0 : i32, i32
  }
  func.func @transform_8(%arg0: i32) -> (i32, i32, i32) {
    %c0_i32 = arith.constant 0 : i32
    %c0_i32_0 = arith.constant 0 : i32
    %c0_i32_1 = arith.constant 0 : i32
    return %arg0, %c0_i32, %c0_i32_0 : i32, i32, i32
  }
  func.func @transform_9(%arg0: i32) -> (i32, i32) {
    %c0_i32 = arith.constant 0 : i32
    %c0_i32_0 = arith.constant 0 : i32
    %c0_i32_1 = arith.constant 0 : i32
    return %c0_i32, %c0_i32_0 : i32, i32
  }
}

</mosaic_0001>

<llo_original>
// kernel: decoder_forward_steps.1
$region0: #{decoder_forward_steps.1}
  #allocation0 [shape = 'u32[]', space=smem, size = 0x4, offset = 0x4, fixed_abs, tag = 'smem constant byte address 0x4 - core index']
  #allocation1 [shape = 'u32[144,128]{1,0:T(1,128)}', space=vmem, size = 0x12000, scoped, tag = 'internal scratch']
  #allocation2 [shape = 'f32[8,128]{1,0:T(8,128)}', space=vmem, size = 0x1000, scoped, tag = 'scratch operand']
  %s0 = inlined_call_operand.vmem [shape: s32[8,8,1], index: 0, kind: input, shape index: {}]
  %s1 = inlined_call_operand.vmem [shape: f32[8,128], index: 1, kind: input, shape index: {}]
  %s2 = inlined_call_operand.vmem [shape: bf16[160,128], index: 2, kind: input, shape index: {}]
  %s3 = inlined_call_operand.vmem [shape: f32[1,128], index: 3, kind: input, shape index: {}]
  %s4 = inlined_call_operand.vmem [shape: bf16[64,128], index: 4, kind: input, shape index: {}]
  %s5 = inlined_call_operand.vmem [shape: f32[1,128], index: 5, kind: input, shape index: {}]
  %s6 = inlined_call_operand.vmem [shape: bf16[32,128], index: 6, kind: input, shape index: {}]
  %s7 = inlined_call_operand.vmem [shape: f32[1,128], index: 7, kind: input, shape index: {}]
  %s8 = inlined_call_operand.hbm [shape: f32[8,8,128], index: 8, kind: output, shape index: {0}]
  %s9 = inlined_call_operand.vmem [shape: f32[8,128], index: 9, kind: output, shape index: {1}]
  %10 = xla_tuple %s8, %s9
  %s11 = sld [smem:[#allocation0]]
  $region81: #{decoder_forward_steps.1} parent=0
    _
  %s13 = ssub.s32 1, %s11
  %s14 = scalar_select 0, %s13, %s11
  $region1: #{decoder_forward_steps.1} parent=0
    #allocation3 [shape = 'u8[8192]{0}', space=vmem, size = 0x2000, scoped, tag = 'output window, operand 0']
    #allocation4 [shape = 's32[2]{0}', space=sflag, size = 0x8, scoped, tag = 'scoped memory for decoder_forward_steps.1']
    %15 = vsyncpa [#allocation4], 0
    %s16 = scalar_lea.sflag [#allocation4], 1
    %17 = vsyncpa %s16, 0
    loop: start=0, step=1, limit=10
    $region2: #{decoder_forward_steps.1} parent=1 // loop_pre_header
      _
    $region3: #{decoder_forward_steps.1} parent=1 // loop_header
      %s19 = sphi 0, %s23
      %p20 = scmp.ge.s32.totalorder %s19, 10
      %s29 = sphi 0, %s31
      %s32 = sphi 0, %s29
      %s33 = sphi 0, %s32
      %s49 = sphi 0, %s33
      %s53 = sphi 0, %s53
      %s55 = sphi 0, %s53
      %s56 = sphi 0, %s55
      %s70 = sphi 0, %s56
      %s74 = sphi 0, %s74
      %s76 = sphi 0, %s74
      %s77 = sphi 0, %s76
      %s91 = sphi 0, %s77
      %s95 = sphi 0, %s95
      %s97 = sphi 0, %s95
      %s98 = sphi 0, %s97
      %s112 = sphi 0, %s98
      %s116 = sphi 0, %s116
      %s118 = sphi 0, %s116
      %s119 = sphi 0, %s118
      %s133 = sphi 0, %s119
      %s137 = sphi 0, %s137
      %s139 = sphi 0, %s137
      %s140 = sphi 0, %s139
      %s154 = sphi 0, %s140
      %s158 = sphi 0, %s158
      %s160 = sphi 0, %s158
      %s161 = sphi 0, %s160
      %s175 = sphi 0, %s161
      %s179 = sphi 0, %s179
      %s181 = sphi 0, %s179
      %s182 = sphi 0, %s181
      %s196 = sphi 0, %s182
      %s202 = sphi 0, %s204
      %s205 = sphi 0, %s202
      %s206 = sphi 0, %s205
      %s222 = sphi 0, %s206
      %s226 = sphi 0, %s226
      %s228 = sphi 0, %s226
      %s229 = sphi 0, %s228
      %s243 = sphi 0, %s229
    $region4: #{decoder_forward_steps.1} parent=1 // loop_header_branch
      %22 = sbr.rel (%p20) target = $region8
    $region5: #{decoder_forward_steps.1} parent=1 // loop_body
      %s24 = ssub.s32 %s19, 1
      %s25 = ssub.s32 %s19, 2
      %s26 = sadd.s32 %s19, 1
      %s27 = ssub.s32 %s19, %s26
      %p28 = scmp.eq.s32.totalorder %s27, 0
      %s30 = sadd.s32 %s29, 1
      %s31 = scalar_select %p28, %s29, %s30
      %p34 = pneg %p28
      %p35 = scmp.eq.s32.totalorder %s19, 7
      %p36 = por %p34, %p35
      %p37 = scmp.ne.s32.totalorder %s29, %s32
      %p38 = scmp.eq.s32.totalorder %s19, 0
      %p39 = por %p37, %p38
      %p40 = scmp.ne.s32.totalorder %s29, %s32
      %p41 = scmp.eq.s32.totalorder %s24, 7
      %p42 = por %p40, %p41
      %p43 = scmp.ne.s32.totalorder %s32, %s33
      %p44 = scmp.eq.s32.totalorder %s24, 0
      %p45 = por %p43, %p44
      %p46 = scmp.ne.s32.totalorder %s32, %s33
      %p47 = scmp.eq.s32.totalorder %s25, 7
      %p48 = por %p46, %p47
      %p50 = scmp.ne.s32.totalorder %s33, %s49
      %p51 = scmp.eq.s32.totalorder %s25, 0
      %p52 = por %p50, %p51
      %s54 = sadd.s32 %s53, 1
      %p57 = scmp.eq.s32.totalorder %s19, 7
      %p58 = scmp.ne.s32.totalorder %s53, %s55
      %p59 = scmp.eq.s32.totalorder %s19, 0
      %p60 = por %p58, %p59
      %p61 = scmp.ne.s32.totalorder %s53, %s55
      %p62 = scmp.eq.s32.totalorder %s24, 7
      %p63 = por %p61, %p62
      %p64 = scmp.ne.s32.totalorder %s55, %s56
      %p65 = scmp.eq.s32.totalorder %s24, 0
      %p66 = por %p64, %p65
      %p67 = scmp.ne.s32.totalorder %s55, %s56
      %p68 = scmp.eq.s32.totalorder %s25, 7
      %p69 = por %p67, %p68
      %p71 = scmp.ne.s32.totalorder %s56, %s70
      %p72 = scmp.eq.s32.totalorder %s25, 0
      %p73 = por %p71, %p72
      %s75 = sadd.s32 %s74, 1
      %p78 = scmp.eq.s32.totalorder %s19, 7
      %p79 = scmp.ne.s32.totalorder %s74, %s76
      %p80 = scmp.eq.s32.totalorder %s19, 0
      %p81 = por %p79, %p80
      %p82 = scmp.ne.s32.totalorder %s74, %s76
      %p83 = scmp.eq.s32.totalorder %s24, 7
      %p84 = por %p82, %p83
      %p85 = scmp.ne.s32.totalorder %s76, %s77
      %p86 = scmp.eq.s32.totalorder %s24, 0
      %p87 = por %p85, %p86
      %p88 = scmp.ne.s32.totalorder %s76, %s77
      %p89 = scmp.eq.s32.totalorder %s25, 7
      %p90 = por %p88, %p89
      %p92 = scmp.ne.s32.totalorder %s77, %s91
      %p93 = scmp.eq.s32.totalorder %s25, 0
      %p94 = por %p92, %p93
      %s96 = sadd.s32 %s95, 1
      %p99 = scmp.eq.s32.totalorder %s19, 7
      %p100 = scmp.ne.s32.totalorder %s95, %s97
      %p101 = scmp.eq.s32.totalorder %s19, 0
      %p102 = por %p100, %p101
      %p103 = scmp.ne.s32.totalorder %s95, %s97
      %p104 = scmp.eq.s32.totalorder %s24, 7
      %p105 = por %p103, %p104
      %p106 = scmp.ne.s32.totalorder %s97, %s98
      %p107 = scmp.eq.s32.totalorder %s24, 0
      %p108 = por %p106, %p107
      %p109 = scmp.ne.s32.totalorder %s97, %s98
      %p110 = scmp.eq.s32.totalorder %s25, 7
      %p111 = por %p109, %p110
      %p113 = scmp.ne.s32.totalorder %s98, %s112
      %p114 = scmp.eq.s32.totalorder %s25, 0
      %p115 = por %p113, %p114
      %s117 = sadd.s32 %s116, 1
      %p120 = scmp.eq.s32.totalorder %s19, 7
      %p121 = scmp.ne.s32.totalorder %s116, %s118
      %p122 = scmp.eq.s32.totalorder %s19, 0
      %p123 = por %p121, %p122
      %p124 = scmp.ne.s32.totalorder %s116, %s118
      %p125 = scmp.eq.s32.totalorder %s24, 7
      %p126 = por %p124, %p125
      %p127 = scmp.ne.s32.totalorder %s118, %s119
      %p128 = scmp.eq.s32.totalorder %s24, 0
      %p129 = por %p127, %p128
      %p130 = scmp.ne.s32.totalorder %s118, %s119
      %p131 = scmp.eq.s32.totalorder %s25, 7
      %p132 = por %p130, %p131
      %p134 = scmp.ne.s32.totalorder %s119, %s133
      %p135 = scmp.eq.s32.totalorder %s25, 0
      %p136 = por %p134, %p135
      %s138 = sadd.s32 %s137, 1
      %p141 = scmp.eq.s32.totalorder %s19, 7
      %p142 = scmp.ne.s32.totalorder %s137, %s139
      %p143 = scmp.eq.s32.totalorder %s19, 0
      %p144 = por %p142, %p143
      %p145 = scmp.ne.s32.totalorder %s137, %s139
      %p146 = scmp.eq.s32.totalorder %s24, 7
      %p147 = por %p145, %p146
      %p148 = scmp.ne.s32.totalorder %s139, %s140
      %p149 = scmp.eq.s32.totalorder %s24, 0
      %p150 = por %p148, %p149
      %p151 = scmp.ne.s32.totalorder %s139, %s140
      %p152 = scmp.eq.s32.totalorder %s25, 7
      %p153 = por %p151, %p152
      %p155 = scmp.ne.s32.totalorder %s140, %s154
      %p156 = scmp.eq.s32.totalorder %s25, 0
      %p157 = por %p155, %p156
      %s159 = sadd.s32 %s158, 1
      %p162 = scmp.eq.s32.totalorder %s19, 7
      %p163 = scmp.ne.s32.totalorder %s158, %s160
      %p164 = scmp.eq.s32.totalorder %s19, 0
      %p165 = por %p163, %p164
      %p166 = scmp.ne.s32.totalorder %s158, %s160
      %p167 = scmp.eq.s32.totalorder %s24, 7
      %p168 = por %p166, %p167
      %p169 = scmp.ne.s32.totalorder %s160, %s161
      %p170 = scmp.eq.s32.totalorder %s24, 0
      %p171 = por %p169, %p170
      %p172 = scmp.ne.s32.totalorder %s160, %s161
      %p173 = scmp.eq.s32.totalorder %s25, 7
      %p174 = por %p172, %p173
      %p176 = scmp.ne.s32.totalorder %s161, %s175
      %p177 = scmp.eq.s32.totalorder %s25, 0
      %p178 = por %p176, %p177
      %s180 = sadd.s32 %s179, 1
      %p183 = scmp.eq.s32.totalorder %s19, 7
      %p184 = scmp.ne.s32.totalorder %s179, %s181
      %p185 = scmp.eq.s32.totalorder %s19, 0
      %p186 = por %p184, %p185
      %p187 = scmp.ne.s32.totalorder %s179, %s181
      %p188 = scmp.eq.s32.totalorder %s24, 7
      %p189 = por %p187, %p188
      %p190 = scmp.ne.s32.totalorder %s181, %s182
      %p191 = scmp.eq.s32.totalorder %s24, 0
      %p192 = por %p190, %p191
      %p193 = scmp.ne.s32.totalorder %s181, %s182
      %p194 = scmp.eq.s32.totalorder %s25, 7
      %p195 = por %p193, %p194
      %p197 = scmp.ne.s32.totalorder %s182, %s196
      %p198 = scmp.eq.s32.totalorder %s25, 0
      %p199 = por %p197, %p198
      %s200 = ssub.s32 %s19, %s26
      %p201 = scmp.eq.s32.totalorder %s200, 0
      %s203 = sadd.s32 %s202, 1
      %s204 = scalar_select %p201, %s202, %s203
      %p207 = pneg %p201
      %p208 = scmp.eq.s32.totalorder %s19, 7
      %p209 = por %p207, %p208
      %p210 = scmp.ne.s32.totalorder %s202, %s205
      %p211 = scmp.eq.s32.totalorder %s19, 0
      %p212 = por %p210, %p211
      %p213 = scmp.ne.s32.totalorder %s202, %s205
      %p214 = scmp.eq.s32.totalorder %s24, 7
      %p215 = por %p213, %p214
      %p216 = scmp.ne.s32.totalorder %s205, %s206
      %p217 = scmp.eq.s32.totalorder %s24, 0
      %p218 = por %p216, %p217
      %p219 = scmp.ne.s32.totalorder %s205, %s206
      %p220 = scmp.eq.s32.totalorder %s25, 7
      %p221 = por %p219, %p220
      %p223 = scmp.ne.s32.totalorder %s206, %s222
      %p224 = scmp.eq.s32.totalorder %s25, 0
      %p225 = por %p223, %p224
      %s227 = sadd.s32 %s226, 1
      %p230 = scmp.eq.s32.totalorder %s19, 7
      %p231 = scmp.ne.s32.totalorder %s226, %s228
      %p232 = scmp.eq.s32.totalorder %s19, 0
      %p233 = por %p231, %p232
      %p234 = scmp.ne.s32.totalorder %s226, %s228
      %p235 = scmp.eq.s32.totalorder %s24, 7
      %p236 = por %p234, %p235
      %p237 = scmp.ne.s32.totalorder %s228, %s229
      %p238 = scmp.eq.s32.totalorder %s24, 0
      %p239 = por %p237, %p238
      %p240 = scmp.ne.s32.totalorder %s228, %s229
      %p241 = scmp.eq.s32.totalorder %s25, 7
      %p242 = por %p240, %p241
      %p244 = scmp.ne.s32.totalorder %s229, %s243
      %p245 = scmp.eq.s32.totalorder %s25, 0
      %p246 = por %p244, %p245
      %p247 = scmp.le.s32.totalorder 1, %s19
      %p248 = scmp.lt.s32.totalorder %s19, 9
      %p249 = pnand %p247, %p248
      %p250 = pneg %p249
      // Predicated region
      $region9: #{decoder_forward_steps.1} parent=5 // pred_check
        _
      $region10: #{decoder_forward_steps.1} parent=5 // pred_check_branch
        %252 = sbr.rel (%p249) target = $region12
      $region11: #{decoder_forward_steps.1} parent=5 // pred_region
        %s253 = ssub.s32 %s19, 1
        // Predicated region
        $region13: #{decoder_forward_steps.1} parent=11 // pred_check
          %p254 = pneg %p66
        $region14: #{decoder_forward_steps.1} parent=11 // pred_check_branch
          %256 = sbr.rel (%p254) target = $region16
        $region15: #{decoder_forward_steps.1} parent=11 // pred_region
          _
        $region16: #{decoder_forward_steps.1} parent=11 // pred_fallthru
          _
        // Predicated region
        $region17: #{decoder_forward_steps.1} parent=11 // pred_check
          %p257 = pneg %p87
        $region18: #{decoder_forward_steps.1} parent=11 // pred_check_branch
          %259 = sbr.rel (%p257) target = $region20
        $region19: #{decoder_forward_steps.1} parent=11 // pred_region
          _
        $region20: #{decoder_forward_steps.1} parent=11 // pred_fallthru
          _
        // Predicated region
        $region21: #{decoder_forward_steps.1} parent=11 // pred_check
          %p260 = pneg %p108
        $region22: #{decoder_forward_steps.1} parent=11 // pred_check_branch
          %262 = sbr.rel (%p260) target = $region24
        $region23: #{decoder_forward_steps.1} parent=11 // pred_region
          _
        $region24: #{decoder_forward_steps.1} parent=11 // pred_fallthru
          _
        // Predicated region
        $region25: #{decoder_forward_steps.1} parent=11 // pred_check
          %p263 = pneg %p129
        $region26: #{decoder_forward_steps.1} parent=11 // pred_check_branch
          %265 = sbr.rel (%p263) target = $region28
        $region27: #{decoder_forward_steps.1} parent=11 // pred_region
          _
        $region28: #{decoder_forward_steps.1} parent=11 // pred_fallthru
          _
        // Predicated region
        $region29: #{decoder_forward_steps.1} parent=11 // pred_check
          %p266 = pneg %p150
        $region30: #{decoder_forward_steps.1} parent=11 // pred_check_branch
          %268 = sbr.rel (%p266) target = $region32
        $region31: #{decoder_forward_steps.1} parent=11 // pred_region
          _
        $region32: #{decoder_forward_steps.1} parent=11 // pred_fallthru
          _
        // Predicated region
        $region33: #{decoder_forward_steps.1} parent=11 // pred_check
          %p269 = pneg %p171
        $region34: #{decoder_forward_steps.1} parent=11 // pred_check_branch
          %271 = sbr.rel (%p269) target = $region36
        $region35: #{decoder_forward_steps.1} parent=11 // pred_region
          _
        $region36: #{decoder_forward_steps.1} parent=11 // pred_fallthru
          _
        // Predicated region
        $region37: #{decoder_forward_steps.1} parent=11 // pred_check
          %p272 = pneg %p192
        $region38: #{decoder_forward_steps.1} parent=11 // pred_check_branch
          %274 = sbr.rel (%p272) target = $region40
        $region39: #{decoder_forward_steps.1} parent=11 // pred_region
          _
        $region40: #{decoder_forward_steps.1} parent=11 // pred_fallthru
          _
      $region12: #{decoder_forward_steps.1} parent=5 // pred_fallthru
        _
      %p275 = scmp.lt.s32.totalorder %s19, 8
      // Predicated region
      $region41: #{decoder_forward_steps.1} parent=5 // pred_check
        %p276 = pneg %p275
      $region42: #{decoder_forward_steps.1} parent=5 // pred_check_branch
        %278 = sbr.rel (%p276) target = $region44
      $region43: #{decoder_forward_steps.1} parent=5 // pred_region
        // Predicated region
        $region45: #{decoder_forward_steps.1} parent=43 // pred_check
          %p279 = pneg %p39
        $region46: #{decoder_forward_steps.1} parent=43 // pred_check_branch
          %281 = sbr.rel (%p279) target = $region48
        $region47: #{decoder_forward_steps.1} parent=43 // pred_region
          %p282 = scmp.lt.s32.totalorder %s19, 7
          %s283 = scalar_select %p282, %s19, 7
          %s284 = smul.addr %s283, 8
          %s285 = scalar_lea.vmem %s0, %s284
        $region48: #{decoder_forward_steps.1} parent=43 // pred_fallthru
          _
      $region44: #{decoder_forward_steps.1} parent=5 // pred_fallthru
        _
      %p286 = scmp.le.s32.totalorder 1, %s19
      %p287 = scmp.lt.s32.totalorder %s19, 9
      %p288 = pnand %p286, %p287
      %p289 = pneg %p288
      // Predicated region
      $region49: #{decoder_forward_steps.1} parent=5 // pred_check
        _
      $region50: #{decoder_forward_steps.1} parent=5 // pred_check_branch
        %291 = sbr.rel (%p288) target = $region52
      $region51: #{decoder_forward_steps.1} parent=5 // pred_region
        %s292 = ssub.s32 %s19, 1
        %p293 = scmp.lt.s32.totalorder %s24, 7
        %s294 = scalar_select %p293, %s24, 7
        %s295 = smul.addr %s294, 8
        %s296 = scalar_lea.vmem %s0, %s295
        %p297 = pneg %p45
        %p298 = pneg %p42
        %p299 = pneg %p66
        %p300 = pneg %p63
        %p301 = pneg %p87
        %p302 = pneg %p84
        %p303 = pneg %p108
        %p304 = pneg %p105
        %p305 = pneg %p129
        %p306 = pneg %p126
        %p307 = pneg %p150
        %p308 = pneg %p147
        %p309 = pneg %p171
        %p310 = pneg %p168
        %p311 = pneg %p192
        %p312 = pneg %p189
        %p313 = pneg %p218
        %p314 = pneg %p215
        %s315 = sand.u32 %s205, 1
        %s316 = scalar_lea.sflag [#allocation4], %s315
        %s317 = sand.u32 %s205, 1
        %s318 = smul.addr %s317, 8
        %s319 = scalar_lea.vmem [#allocation3], %s318
        %p320 = pneg %p239
        %p321 = pneg %p236
        %p322 = scmp.lt.s32.totalorder %s24, 7
        %s323 = scalar_select %p322, %s24, 7
        %s324 = smul.addr %s323, 8
        %s325 = scalar_lea.vmem %s0, %s324
        %p327 = scmp.eq.s32.totalorder %s24, 0
        // Predicated region
        $region53: #{decoder_forward_steps.1} parent=51 // pred_check
          %p328 = pneg %p327
        $region54: #{decoder_forward_steps.1} parent=51 // pred_check_branch
          %330 = sbr.rel (%p328) target = $region56
        $region55: #{decoder_forward_steps.1} parent=51 // pred_region
          %v331 = vld [vmem:[%s1] sm:$0xff]
          %332 = vst [vmem:[#allocation2] sm:$0xff] %v331
        $region56: #{decoder_forward_steps.1} parent=51 // pred_fallthru
          _
        %v333 = vld [vmem:[#allocation2] sm:$0xff]
        %v334 = vld [vmem:[%s325] sm:$0xff]
        %v335 = vlaneseq
        %v336 = vand.u32 %v335, 127
        %337 = vset.pattern.permute.xlu0 0
        %338 = vperm.xlu0 %337, %v334
        %v339 = vpop.permute.xlu0 %338
        %vm340 = vcmp.eq.s32.totalorder %v336, %v339
        %v341 = vsel %vm340, 1, 0
        %v342 = vcvt.s32.f32 %v341
        %v343 = vpack.c.bf16 %v342, %v342
        %v344 = vpack.c.bf16 %v333, %v333
        %v345 = vld [vmem:[%s2] sm:$0xf]
        %v346 = vld [vmem:[%s2 + $0x4] sm:$0xf]
        %v347 = vld [vmem:[%s2 + $0x8] sm:$0xf]
        %v348 = vld [vmem:[%s2 + $0xc] sm:$0xf]
        %v349 = vld [vmem:[%s2 + $0x10] sm:$0xf]
        %v350 = vld [vmem:[%s2 + $0x14] sm:$0xf]
        %v351 = vld [vmem:[%s2 + $0x18] sm:$0xf]
        %v352 = vld [vmem:[%s2 + $0x1c] sm:$0xf]
        %v353 = vld [vmem:[%s2 + $0x20] sm:$0xf]
        %v354 = vld [vmem:[%s2 + $0x24] sm:$0xf]
        %v355 = vld [vmem:[%s2 + $0x28] sm:$0xf]
        %v356 = vld [vmem:[%s2 + $0x2c] sm:$0xf]
        %v357 = vld [vmem:[%s2 + $0x30] sm:$0xf]
        %v358 = vld [vmem:[%s2 + $0x34] sm:$0xf]
        %v359 = vld [vmem:[%s2 + $0x38] sm:$0xf]
        %v360 = vld [vmem:[%s2 + $0x3c] sm:$0xf]
        %v361 = vld [vmem:[%s2 + $0x40] sm:$0xf]
        %v362 = vld [vmem:[%s2 + $0x44] sm:$0xf]
        %v363 = vld [vmem:[%s2 + $0x48] sm:$0xf]
        %v364 = vld [vmem:[%s2 + $0x4c] sm:$0xf]
        %v365 = vld [vmem:[%s3] sm:$0x1]
        %v367 = vlaneseq
        %v368 = vshrl.u32 %v367, 7
        %v369 = vsub.s32 0, %v368
        %v370 = vrot.slane %v365, %v369
        %v392 = vunpack.c.l.b16 %v345
        %v393 = vunpack.c.l.b16 %v346
        %v394 = vunpack.c.l.b16 %v347
        %v395 = vunpack.c.l.b16 %v348
        %v396 = vunpack.c.l.b16 %v349
        %v397 = vunpack.c.l.b16 %v350
        %v398 = vunpack.c.l.b16 %v351
        %v399 = vunpack.c.l.b16 %v352
        %v400 = vunpack.c.l.b16 %v353
        %v401 = vunpack.c.l.b16 %v354
        %v402 = vunpack.c.l.b16 %v355
        %v403 = vunpack.c.l.b16 %v356
        %v404 = vunpack.c.l.b16 %v357
        %v405 = vunpack.c.l.b16 %v358
        %v406 = vunpack.c.l.b16 %v359
        %v407 = vunpack.c.l.b16 %v360
        %v408 = vunpack.c.l.b16 %v361
        %v409 = vunpack.c.l.b16 %v362
        %v410 = vunpack.c.l.b16 %v363
        %v411 = vunpack.c.l.b16 %v364
        %v412 = vpack.c.b16 %v393, %v392
        %v413 = vpack.c.b16 %v395, %v394
        %v414 = vpack.c.b16 %v397, %v396
        %v415 = vpack.c.b16 %v399, %v398
        %v416 = vpack.c.b16 %v401, %v400
        %v417 = vpack.c.b16 %v403, %v402
        %v418 = vpack.c.b16 %v405, %v404
        %v419 = vpack.c.b16 %v407, %v406
        %v420 = vpack.c.b16 %v409, %v408
        %v421 = vpack.c.b16 %v411, %v410
        %vm432 = vcmask 261120
        %v434 = vsel %vm432, %v344, 0
        %436 = vmatprep.subr.bf16.mxu0 0
        %437 = vmatpush1.bf16.msra.mxu0 %v412
        %438 = vmatprep.subr.bf16.mxu0 0
        %439 = vmatpush1.bf16.msra.mxu0 %v413
        %440 = vmatprep.subr.bf16.mxu0 0
        %441 = vmatpush1.bf16.msra.mxu0 %v414
        %442 = vmatprep.subr.bf16.mxu0 0
        %443 = vmatpush1.bf16.msra.mxu0 %v415
        %444 = vmatprep.subr.bf16.mxu0 0
        %445 = vmatpush1.bf16.msra.mxu0 %v416
        %446 = vmatprep.subr.bf16.mxu0 0
        %447 = vmatpush1.bf16.msra.mxu0 %v417
        %448 = vmatprep.subr.bf16.mxu0 0
        %449 = vmatpush1.bf16.msra.mxu0 %v418
        %450 = vmatprep.subr.bf16.mxu0 0
        %451 = vmatpush1.bf16.msra.mxu0 %v419
        %452 = vmatprep.subr.bf16.mxu0 0
        %453 = vmatpush1.bf16.msra.mxu0 %v420
        %454 = vmatprep.subr.bf16.mxu0 0
        %455 = vmatpush1.bf16.msra.mxu0 %v421
        %456 = vmatprep.subr.bf16.mxu0 0
        %457 = vmatpush1.bf16.msra.mxu0 0
        %458 = vmatprep.subr.bf16.mxu0 0
        %459 = vmatpush1.bf16.msra.mxu0 0
        %460 = vmatprep.subr.bf16.mxu0 0
        %461 = vmatpush1.bf16.msra.mxu0 0
        %462 = vmatprep.subr.bf16.mxu0 0
        %463 = vmatpush1.bf16.msra.mxu0 0
        %464 = vmatprep.subr.bf16.mxu0 0
        %465 = vmatpush1.bf16.msra.mxu0 0
        %466 = vmatprep.subr.bf16.mxu0 0
        %467 = vmatpush1.bf16.msra.mxu0 0
        %468 = vmatprep.mubr.bf16.mxu0 %v434
        %469 = vmatmul.mubr.bf16.gmra.mrb[0].mxu0 %v343
        %v470 = vpop.f32.mrb[0].mxu0
        %v471 = vadd.f32 %v370, %v470
        %v472 = vpop.f32.mrb[0].mxu0
        %v473 = vpop.f32.mrb[0].mxu0
        %v474 = vpop.f32.mrb[0].mxu0
        %475 = vdwg.mxu0
        %v476 = vtanh.pop %v471
        %vm477 = vcmp.ge.s32.totalorder %v336, 64
        %vm478 = vcmp.lt.s32.totalorder %v336, 96
        %vm479 = vmand %vm477, %vm478
        %v480 = vadd.f32 %v476, 1.0
        %v481 = vmul.f32 %v480, 0.5
        %v482 = vsel %vm479, %v476, %v481
        %484 = vrot.lane.b32.xlu0 %v333, 96
        %v485 = vpop.permute.xlu0 %484
        %v487 = vmul.f32 %v482, %v485
        %489 = vrot.lane.b32.xlu0 %v482, 64
        %v490 = vpop.permute.xlu0 %489
        %v492 = vmul.f32 %v482, %v490
        %494 = vrot.lane.b32.xlu0 %v492, 32
        %v495 = vpop.permute.xlu0 %494
        %v497 = vadd.f32 %v487, %v495
        %v498 = vtanh.pop %v497
        %500 = vrot.lane.b32.xlu0 %v498, 64
        %v501 = vpop.permute.xlu0 %500
        %v503 = vmul.f32 %v482, %v501
        %505 = vrot.lane.b32.xlu0 %v503, 32
        %v506 = vpop.permute.xlu0 %505
        %v508 = vsel %vm432, %v506, %v333
        %v509 = vpack.c.bf16 %v508, %v508
        %v510 = vld [vmem:[%s4] sm:$0xf]
        %v511 = vld [vmem:[%s4 + $0x4] sm:$0xf]
        %v512 = vld [vmem:[%s4 + $0x8] sm:$0xf]
        %v513 = vld [vmem:[%s4 + $0xc] sm:$0xf]
        %v514 = vld [vmem:[%s4 + $0x10] sm:$0xf]
        %v515 = vld [vmem:[%s4 + $0x14] sm:$0xf]
        %v516 = vld [vmem:[%s4 + $0x18] sm:$0xf]
        %v517 = vld [vmem:[%s4 + $0x1c] sm:$0xf]
        %v518 = vld [vmem:[%s5] sm:$0x1]
        %v520 = vlaneseq
        %v521 = vshrl.u32 %v520, 7
        %v522 = vsub.s32 0, %v521
        %v523 = vrot.slane %v518, %v522
        %v533 = vunpack.c.l.b16 %v510
        %v534 = vunpack.c.l.b16 %v511
        %v535 = vunpack.c.l.b16 %v512
        %v536 = vunpack.c.l.b16 %v513
        %v537 = vunpack.c.l.b16 %v514
        %v538 = vunpack.c.l.b16 %v515
        %v539 = vunpack.c.l.b16 %v516
        %v540 = vunpack.c.l.b16 %v517
        %v541 = vpack.c.b16 %v534, %v533
        %v542 = vpack.c.b16 %v536, %v535
        %v543 = vpack.c.b16 %v538, %v537
        %v544 = vpack.c.b16 %v540, %v539
        %vm549 = vcmask 523264
        %v551 = vsel %vm549, %v509, 0
        %553 = vmatprep.subr.bf16.mxu0 0
        %554 = vmatpush1.bf16.msra.mxu0 %v541
        %555 = vmatprep.subr.bf16.mxu0 0
        %556 = vmatpush1.bf16.msra.mxu0 %v542
        %557 = vmatprep.subr.bf16.mxu0 0
        %558 = vmatpush1.bf16.msra.mxu0 %v543
        %559 = vmatprep.subr.bf16.mxu0 0
        %560 = vmatpush1.bf16.msra.mxu0 %v544
        %561 = vmatprep.subr.bf16.mxu0 0
        %562 = vmatpush1.bf16.msra.mxu0 0
        %563 = vmatprep.subr.bf16.mxu0 0
        %564 = vmatpush1.bf16.msra.mxu0 0
        %565 = vmatprep.subr.bf16.mxu0 0
        %566 = vmatpush1.bf16.msra.mxu0 0
        %567 = vmatprep.subr.bf16.mxu0 0
        %568 = vmatpush1.bf16.msra.mxu0 0
        %569 = vmatprep.subr.bf16.mxu0 0
        %570 = vmatpush1.bf16.msra.mxu0 0
        %571 = vmatprep.subr.bf16.mxu0 0
        %572 = vmatpush1.bf16.msra.mxu0 0
        %573 = vmatprep.subr.bf16.mxu0 0
        %574 = vmatpush1.bf16.msra.mxu0 0
        %575 = vmatprep.subr.bf16.mxu0 0
        %576 = vmatpush1.bf16.msra.mxu0 0
        %577 = vmatprep.subr.bf16.mxu0 0
        %578 = vmatpush1.bf16.msra.mxu0 0
        %579 = vmatprep.subr.bf16.mxu0 0
        %580 = vmatpush1.bf16.msra.mxu0 0
        %581 = vmatprep.subr.bf16.mxu0 0
        %582 = vmatpush1.bf16.msra.mxu0 0
        %583 = vmatprep.subr.bf16.mxu0 0
        %584 = vmatpush1.bf16.msra.mxu0 0
        %585 = vmatprep.mubr.bf16.mxu0 0
        %586 = vmatmul.mubr.bf16.gmra.mrb[0].mxu0 %v551
        %v587 = vpop.f32.mrb[0].mxu0
        %v588 = vadd.f32 %v523, %v587
        %v589 = vpop.f32.mrb[0].mxu0
        %v590 = vpop.f32.mrb[0].mxu0
        %v591 = vpop.f32.mrb[0].mxu0
        %592 = vdwg.mxu0
        %v593 = vtanh.pop %v588
        %v594 = vadd.f32 %v593, 1.0
        %v595 = vmul.f32 %v594, 0.5
        %v596 = vsel %vm479, %v593, %v595
        %597 = vrot.lane.b32.xlu0 %v333, 64
        %v598 = vpop.permute.xlu0 %597
        %v600 = vmul.f32 %v596, %v598
        %602 = vrot.lane.b32.xlu0 %v596, 64
        %v603 = vpop.permute.xlu0 %602
        %v605 = vmul.f32 %v596, %v603
        %607 = vrot.lane.b32.xlu0 %v605, 32
        %v608 = vpop.permute.xlu0 %607
        %v610 = vadd.f32 %v600, %v608
        %v611 = vtanh.pop %v610
        %613 = vrot.lane.b32.xlu0 %v611, 64
        %v614 = vpop.permute.xlu0 %613
        %v616 = vmul.f32 %v596, %v614
        %v617 = vpack.c.bf16 %v616, %v616
        %v618 = vld [vmem:[%s6] sm:$0xf]
        %v619 = vld [vmem:[%s6 + $0x4] sm:$0xf]
        %v620 = vld [vmem:[%s6 + $0x8] sm:$0xf]
        %v621 = vld [vmem:[%s6 + $0xc] sm:$0xf]
        %v622 = vld [vmem:[%s7] sm:$0x1]
        %v624 = vlaneseq
        %v625 = vshrl.u32 %v624, 7
        %v626 = vsub.s32 0, %v625
        %v627 = vrot.slane %v622, %v626
        %630 = vrot.lane.b32.xlu0 %v617, 32
        %v631 = vpop.permute.xlu0 %630
        %v636 = vunpack.c.l.b16 %v618
        %v637 = vunpack.c.l.b16 %v619
        %v638 = vunpack.c.l.b16 %v620
        %v639 = vunpack.c.l.b16 %v621
        %v640 = vpack.c.b16 %v637, %v636
        %v641 = vpack.c.b16 %v639, %v638
        %v645 = vsel %vm432, %v631, 0
        %647 = vmatprep.subr.bf16.mxu0 0
        %648 = vmatpush1.bf16.msra.mxu0 %v640
        %649 = vmatprep.subr.bf16.mxu0 0
        %650 = vmatpush1.bf16.msra.mxu0 %v641
        %651 = vmatprep.subr.bf16.mxu0 0
        %652 = vmatpush1.bf16.msra.mxu0 0
        %653 = vmatprep.subr.bf16.mxu0 0
        %654 = vmatpush1.bf16.msra.mxu0 0
        %655 = vmatprep.subr.bf16.mxu0 0
        %656 = vmatpush1.bf16.msra.mxu0 0
        %657 = vmatprep.subr.bf16.mxu0 0
        %658 = vmatpush1.bf16.msra.mxu0 0
        %659 = vmatprep.subr.bf16.mxu0 0
        %660 = vmatpush1.bf16.msra.mxu0 0
        %661 = vmatprep.subr.bf16.mxu0 0
        %662 = vmatpush1.bf16.msra.mxu0 0
        %663 = vmatprep.subr.bf16.mxu0 0
        %664 = vmatpush1.bf16.msra.mxu0 0
        %665 = vmatprep.subr.bf16.mxu0 0
        %666 = vmatpush1.bf16.msra.mxu0 0
        %667 = vmatprep.subr.bf16.mxu0 0
        %668 = vmatpush1.bf16.msra.mxu0 0
        %669 = vmatprep.subr.bf16.mxu0 0
        %670 = vmatpush1.bf16.msra.mxu0 0
        %671 = vmatprep.subr.bf16.mxu0 0
        %672 = vmatpush1.bf16.msra.mxu0 0
        %673 = vmatprep.subr.bf16.mxu0 0
        %674 = vmatpush1.bf16.msra.mxu0 0
        %675 = vmatprep.subr.bf16.mxu0 0
        %676 = vmatpush1.bf16.msra.mxu0 0
        %677 = vmatprep.subr.bf16.mxu0 0
        %678 = vmatpush1.bf16.msra.mxu0 0
        %679 = vmatprep.mubr.bf16.mxu0 0
        %680 = vmatmul.mubr.bf16.gmra.mrb[0].mxu0 %v645
        %v681 = vpop.f32.mrb[0].mxu0
        %v682 = vadd.f32 %v627, %v681
        %v683 = vpop.f32.mrb[0].mxu0
        %v684 = vpop.f32.mrb[0].mxu0
        %v685 = vpop.f32.mrb[0].mxu0
        %686 = vdwg.mxu0
        %687 = vst [vmem:[%s319] sm:$0xff] %v682
        %689 = vrot.lane.b32.xlu0 %v616, 64
        %v690 = vpop.permute.xlu0 %689
        %693 = vrot.lane.b32.xlu0 %v497, 32
        %v694 = vpop.permute.xlu0 %693
        %697 = vrot.lane.b32.xlu0 %v610, 64
        %v698 = vpop.permute.xlu0 %697
        %v700 = vsel %vm432, %v506, %v690
        %v701 = vsel %vm549, %v700, %v694
        %vm702 = vcmask 785408
        %v703 = vsel %vm702, %v701, %v698
        %704 = vst [vmem:[#allocation2] sm:$0xff] %v703
        %p705 = scmp.eq.s32.totalorder %s24, 7
        // Predicated region
        $region57: #{decoder_forward_steps.1} parent=51 // pred_check
          %p706 = pneg %p705
        $region58: #{decoder_forward_steps.1} parent=51 // pred_check_branch
          %708 = sbr.rel (%p706) target = $region60
        $region59: #{decoder_forward_steps.1} parent=51 // pred_region
          %709 = vst [vmem:[%s9] sm:$0xff] %v703
        $region60: #{decoder_forward_steps.1} parent=51 // pred_fallthru
          _
        %s710 = sand.u32 %s205, 1
        %s711 = scalar_lea.sflag [#allocation4], %s710
        %s712 = sand.u32 %s205, 1
        %s713 = smul.addr %s712, 8
        %s714 = scalar_lea.vmem [#allocation3], %s713
        // Predicated region
        $region61: #{decoder_forward_steps.1} parent=51 // pred_check
          %p715 = pneg %p215
        $region62: #{decoder_forward_steps.1} parent=51 // pred_check_branch
          %717 = sbr.rel (%p715) target = $region64
        $region63: #{decoder_forward_steps.1} parent=51 // pred_region
          %s719 = ssub.s32 128, 128
          %720 = vsyncadd %s711, %s719
          %s721 = smul.addr %s24, 128
          %s722 = scalar_lea.hbm %s8, %s721
          %s724 = sshll.u32 %s714, 4
          %s725 = int_to_ptr.vmem [resolvable:$true] %s724
          %727 = dma.vmem_to_hbm [thread:$0]  %s725, 128, %s722, %s711
        $region64: #{decoder_forward_steps.1} parent=51 // pred_fallthru
          _
        // Predicated region
        $region65: #{decoder_forward_steps.1} parent=51 // pred_check
          %p728 = pneg %p236
        $region66: #{decoder_forward_steps.1} parent=51 // pred_check_branch
          %730 = sbr.rel (%p728) target = $region68
        $region67: #{decoder_forward_steps.1} parent=51 // pred_region
          _
        $region68: #{decoder_forward_steps.1} parent=51 // pred_fallthru
          _
        // Predicated region
        $region69: #{decoder_forward_steps.1} parent=51 // pred_check
          %p731 = pneg %p236
        $region70: #{decoder_forward_steps.1} parent=51 // pred_check_branch
          %733 = sbr.rel (%p731) target = $region72
        $region71: #{decoder_forward_steps.1} parent=51 // pred_region
          _
        $region72: #{decoder_forward_steps.1} parent=51 // pred_fallthru
          _
      $region52: #{decoder_forward_steps.1} parent=5 // pred_fallthru
        _
      %p734 = scmp.le.s32.totalorder 2, %s19
      // Predicated region
      $region73: #{decoder_forward_steps.1} parent=5 // pred_check
        %p735 = pneg %p734
      $region74: #{decoder_forward_steps.1} parent=5 // pred_check_branch
        %737 = sbr.rel (%p735) target = $region76
      $region75: #{decoder_forward_steps.1} parent=5 // pred_region
        %s738 = ssub.s32 %s19, 2
        // Predicated region
        $region77: #{decoder_forward_steps.1} parent=75 // pred_check
          %p739 = pneg %p221
        $region78: #{decoder_forward_steps.1} parent=75 // pred_check_branch
          %741 = sbr.rel (%p739) target = $region80
        $region79: #{decoder_forward_steps.1} parent=75 // pred_region
          %s742 = sand.u32 %s206, 1
          %s743 = scalar_lea.sflag [#allocation4], %s742
          %s744 = sand.u32 %s206, 1
          %s745 = smul.addr %s744, 8
          %s746 = scalar_lea.vmem [#allocation3], %s745
          %747 = dma.done %s743, 128
        $region80: #{decoder_forward_steps.1} parent=75 // pred_fallthru
          _
      $region76: #{decoder_forward_steps.1} parent=5 // pred_fallthru
        _
    $region6: #{decoder_forward_steps.1} parent=1 // loop_footer
      %s23 = sadd.s32 1, %s19
    $region7: #{decoder_forward_steps.1} parent=1 // loop_footer_branch
      %18 = sbr.rel target = $region3
    $region8: #{decoder_forward_steps.1} parent=1 // loop_exit
      _
    %748 = vsyncpa [#allocation4], 1
    %s749 = scalar_lea.sflag [#allocation4], 1
    %750 = vsyncpa %s749, 1

</llo_original>
